<compile_context>
chip_gen: v7x
topology: tpu7x:2x2x1
jax: 0.10.0
libtpu: 0.0.40
codegen_flags: <defaults>
</compile_context>

<pallas_src>
import functools

import jax
import jax.numpy as jnp
from jax.experimental import pallas as pl
from jax.experimental.pallas import tpu as pltpu

INPUT_SIZE = 32
HIDDEN1 = 128
HIDDEN2 = 64
NUM_CLASSES = 24
NUM_CLASSES_PADDED = 128          # lane-dense output (avoid masked partial stores)
BN_EPS = 1e-5


def _mlp_bn_kernel(x_ref,
                   w1_ref, g1_ref, be1_ref,
                   w2_ref, g2_ref, be2_ref,
                   w3_ref, b3_ref,
                   o_ref,
                   sum1_ref, sumsq1_ref, sum2_ref, sumsq2_ref,
                   *, batch, block_rows, need_mask):
    phase = pl.program_id(0)      # 0: bn1 stats, 1: bn2 stats, 2: finalize
    tile = pl.program_id(1)       # batch tile
    inv_n = 1.0 / float(batch)

    @pl.when(jnp.logical_and(phase == 0, tile == 0))
    def _init():
        sum1_ref[...] = jnp.zeros_like(sum1_ref)
        sumsq1_ref[...] = jnp.zeros_like(sumsq1_ref)
        sum2_ref[...] = jnp.zeros_like(sum2_ref)
        sumsq2_ref[...] = jnp.zeros_like(sumsq2_ref)

    # fc1 without bias (the bias is cancelled by the BN mean subtraction).
    h1 = jnp.dot(x_ref[...], w1_ref[...],
                 preferred_element_type=jnp.float32)          # [tm, 128] f32

    @pl.when(phase == 0)
    def _phase0():
        # Zero-padded batch rows contribute exactly 0 here (no fc1 bias).
        sum1_ref[...] += jnp.sum(h1, axis=0, keepdims=True)
        sumsq1_ref[...] += jnp.sum(h1 * h1, axis=0, keepdims=True)

    def _bn1_relu():
        mu1 = sum1_ref[...] * inv_n
        var1 = jnp.maximum(sumsq1_ref[...] * inv_n - mu1 * mu1, 0.0)
        scale1 = g1_ref[...] * jax.lax.rsqrt(var1 + BN_EPS)    # gamma folded in
        return jnp.maximum((h1 - mu1) * scale1 + be1_ref[...], 0.0)

    def _fc2(a1):
        return jnp.dot(a1.astype(w2_ref.dtype), w2_ref[...],
                       preferred_element_type=jnp.float32)     # [tm, 64] f32

    @pl.when(phase == 1)
    def _phase1():
        h2 = _fc2(_bn1_relu())
        if need_mask:
            # Mask out zero-padded batch rows (nonzero after bn1 beta/relu).
            row = tile * block_rows + jax.lax.broadcasted_iota(
                jnp.int32, (block_rows, 1), 0)
            h2 = jnp.where(row < batch, h2, 0.0)
        sum2_ref[...] += jnp.sum(h2, axis=0, keepdims=True)
        sumsq2_ref[...] += jnp.sum(h2 * h2, axis=0, keepdims=True)

    @pl.when(phase == 2)
    def _phase2():
        h2 = _fc2(_bn1_relu())
        mu2 = sum2_ref[...] * inv_n
        var2 = jnp.maximum(sumsq2_ref[...] * inv_n - mu2 * mu2, 0.0)
        scale2 = g2_ref[...] * jax.lax.rsqrt(var2 + BN_EPS)
        a2 = jnp.maximum((h2 - mu2) * scale2 + be2_ref[...], 0.0)
        out = jnp.dot(a2.astype(w3_ref.dtype), w3_ref[...],
                      preferred_element_type=jnp.float32)      # [tm, 128] f32
        o_ref[...] = (out + b3_ref[...]).astype(o_ref.dtype)


def symptom_classifier_forward(x, params, *, block_rows=1024, use_bf16=False):
    """x: [B, INPUT_SIZE] f32; params: dict from init_params. Returns [B, 24]."""
    B, F = x.shape
    assert F == INPUT_SIZE

    # Batch tile: multiple of 8 sublanes; pad B so every tile is full (the
    # zero pad rows are exactly-zero bn1-stat contributions and are masked
    # out of the bn2 stats inside the kernel).
    tm = min(block_rows, ((B + 7) // 8) * 8)
    n_tiles = -(-B // tm)
    b_pad = n_tiles * tm
    if b_pad != B:
        x = jnp.pad(x, ((0, b_pad - B), (0, 0)))

    # Lane-dense output: zero-pad fc3 to 128 output columns, slice afterwards.
    w3 = jnp.pad(params["w3"], ((0, 0), (0, NUM_CLASSES_PADDED - NUM_CLASSES)))
    b3 = jnp.pad(params["b3"], ((0, 0), (0, NUM_CLASSES_PADDED - NUM_CLASSES)))

    w1, w2 = params["w1"], params["w2"]
    if use_bf16:  # v6e/v7x MXU native rate; BN elementwise math stays in f32.
        x = x.astype(jnp.bfloat16)
        w1, w2, w3 = (w.astype(jnp.bfloat16) for w in (w1, w2, w3))

    args = (x,
            w1, params["g1"], params["be1"],
            w2, params["g2"], params["be2"],
            w3, b3)

    kernel = functools.partial(_mlp_bn_kernel, batch=B, block_rows=tm,
                               need_mask=(b_pad != B))

    resident = [pl.BlockSpec(a.shape, lambda p, j: (0, 0)) for a in args[1:]]

    out = pl.pallas_call(
        kernel,
        out_shape=jax.ShapeDtypeStruct((b_pad, NUM_CLASSES_PADDED), jnp.float32),
        grid_spec=pltpu.PrefetchScalarGridSpec(
            num_scalar_prefetch=0,
            grid=(3, n_tiles),
            in_specs=[pl.BlockSpec((tm, INPUT_SIZE), lambda p, j: (j, 0))]
                     + resident,
            out_specs=pl.BlockSpec((tm, NUM_CLASSES_PADDED), lambda p, j: (j, 0)),
            scratch_shapes=[pltpu.VMEM((1, HIDDEN1), jnp.float32),   # sum1
                            pltpu.VMEM((1, HIDDEN1), jnp.float32),   # sumsq1
                            pltpu.VMEM((1, HIDDEN2), jnp.float32),   # sum2
                            pltpu.VMEM((1, HIDDEN2), jnp.float32)],  # sumsq2
        ),
        compiler_params=pltpu.CompilerParams(
            dimension_semantics=("arbitrary", "arbitrary")),
    )(*args)

    return out[:B, :NUM_CLASSES]


def init_params(key):
    """Deterministic synthetic init; mirrors PyTorch Linear/BatchNorm shapes.

    nn.Linear stores weight as [out, in]; we pre-transpose to [in, out].
    BatchNorm1d default affine params: gamma=1, beta=0.  b1/b2 are kept only
    for the pure-JAX reference (they are dropped inside the kernel because
    the BN mean subtraction cancels them).
    """
    k1, k2, k3 = jax.random.split(key, 3)

    def linear(k, fan_in, fan_out):
        kw, kb = jax.random.split(k)
        bound = 1.0 / jnp.sqrt(fan_in)
        w = jax.random.uniform(kw, (fan_in, fan_out), jnp.float32, -bound, bound)
        b = jax.random.uniform(kb, (1, fan_out), jnp.float32, -bound, bound)
        return w, b

    w1, b1 = linear(k1, INPUT_SIZE, HIDDEN1)
    w2, b2 = linear(k2, HIDDEN1, HIDDEN2)
    w3, b3 = linear(k3, HIDDEN2, NUM_CLASSES)
    return {
        "w1": w1, "b1": b1,
        "g1": jnp.ones((1, HIDDEN1), jnp.float32),
        "be1": jnp.zeros((1, HIDDEN1), jnp.float32),
        "w2": w2, "b2": b2,
        "g2": jnp.ones((1, HIDDEN2), jnp.float32),
        "be2": jnp.zeros((1, HIDDEN2), jnp.float32),
        "w3": w3, "b3": b3,
    }


def _reference_forward(x, params):
    """Pure-JAX reference matching PyTorch training-mode forward (with biases)."""
    def bn(h, g, b):
        mu = jnp.mean(h, axis=0, keepdims=True)
        var = jnp.mean((h - mu) ** 2, axis=0, keepdims=True)   # biased variance
        return (h - mu) * jax.lax.rsqrt(var + BN_EPS) * g + b

    h1 = x @ params["w1"] + params["b1"]
    a1 = jnp.maximum(bn(h1, params["g1"], params["be1"]), 0.0)
    h2 = a1 @ params["w2"] + params["b2"]
    a2 = jnp.maximum(bn(h2, params["g2"], params["be2"]), 0.0)
    return a2 @ params["w3"] + params["b3"]


if __name__ == "__main__":
    key = jax.random.PRNGKey(0)
    kx1, kx2, kp = jax.random.split(key, 3)
    params = init_params(kp)

    # Small demo batch (BatchNorm in training mode needs batch > 1).
    B = 8
    x = jax.random.normal(kx1, (B, INPUT_SIZE), jnp.float32)
    out = jax.block_until_ready(symptom_classifier_forward(x, params))
    ref = _reference_forward(x, params)
    assert out.shape == (B, NUM_CLASSES), out.shape
    assert jnp.allclose(out, ref, rtol=1e-2, atol=1e-2), \
        float(jnp.max(jnp.abs(out - ref)))

    # Exercise the multi-tile + padded/masked path with a tiny block size.
    B2 = 20
    x2 = jax.random.normal(kx2, (B2, INPUT_SIZE), jnp.float32)
    out2 = jax.block_until_ready(
        symptom_classifier_forward(x2, params, block_rows=8))
    ref2 = _reference_forward(x2, params)
    assert out2.shape == (B2, NUM_CLASSES), out2.shape
    assert jnp.allclose(out2, ref2, rtol=1e-2, atol=1e-2), \
        float(jnp.max(jnp.abs(out2 - ref2)))

    # TODO(synk): BatchNorm running_mean/running_var buffer updates (training
    # side effect) are not materialized; the forward output does not use them.
    print("KERNEL_OK")
</pallas_src>

<mosaic_0001>
module attributes {stable_mosaic.version = 11 : i64} {
  func.func @_mlp_bn_kernel(%arg0: i32, %arg1: i32, %arg2: memref<8x32xf32, #tpu.memory_space<vmem>>, %arg3: memref<32x128xf32, #tpu.memory_space<vmem>>, %arg4: memref<1x128xf32, #tpu.memory_space<vmem>>, %arg5: memref<1x128xf32, #tpu.memory_space<vmem>>, %arg6: memref<128x64xf32, #tpu.memory_space<vmem>>, %arg7: memref<1x64xf32, #tpu.memory_space<vmem>>, %arg8: memref<1x64xf32, #tpu.memory_space<vmem>>, %arg9: memref<64x128xf32, #tpu.memory_space<vmem>>, %arg10: memref<1x128xf32, #tpu.memory_space<vmem>>, %arg11: memref<8x128xf32, #tpu.memory_space<vmem>>, %arg12: memref<1x128xf32, #tpu.memory_space<vmem>>, %arg13: memref<1x128xf32, #tpu.memory_space<vmem>>, %arg14: memref<1x64xf32, #tpu.memory_space<vmem>>, %arg15: memref<1x64xf32, #tpu.memory_space<vmem>>) attributes {dimension_semantics = [#tpu.dimension_semantics<arbitrary>, #tpu.dimension_semantics<arbitrary>], iteration_bounds = array<i64: 3, 1>, scalar_prefetch = 0 : i64, scratch_operands = 4 : i64, tpu.core_type = #tpu.core_type<tc>, window_params = [{transform_indices = @transform_0, window_bounds = array<i64: 8, 32>}, {pipeline_mode = #tpu.pipeline_mode<synchronous>, transform_indices = @transform_1, window_bounds = array<i64: 32, 128>}, {pipeline_mode = #tpu.pipeline_mode<synchronous>, transform_indices = @transform_2, window_bounds = array<i64: 1, 128>}, {pipeline_mode = #tpu.pipeline_mode<synchronous>, transform_indices = @transform_3, window_bounds = array<i64: 1, 128>}, {pipeline_mode = #tpu.pipeline_mode<synchronous>, transform_indices = @transform_4, window_bounds = array<i64: 128, 64>}, {pipeline_mode = #tpu.pipeline_mode<synchronous>, transform_indices = @transform_5, window_bounds = array<i64: 1, 64>}, {pipeline_mode = #tpu.pipeline_mode<synchronous>, transform_indices = @transform_6, window_bounds = array<i64: 1, 64>}, {pipeline_mode = #tpu.pipeline_mode<synchronous>, transform_indices = @transform_7, window_bounds = array<i64: 64, 128>}, {pipeline_mode = #tpu.pipeline_mode<synchronous>, transform_indices = @transform_8, window_bounds = array<i64: 1, 128>}, {transform_indices = @transform_9, window_bounds = array<i64: 8, 128>}]} {
    %c0_i32 = arith.constant 0 : i32
    %0 = arith.cmpi eq, %arg0, %c0_i32 : i32
    %c0_i32_0 = arith.constant 0 : i32
    %1 = arith.cmpi eq, %arg1, %c0_i32_0 : i32
    %2 = arith.andi %0, %1 : i1
    %3 = arith.extui %2 : i1 to i32
    %c0_i32_1 = arith.constant 0 : i32
    %4 = arith.cmpi ne, %3, %c0_i32_1 : i32
    scf.if %4 {
      %cst_9 = arith.constant 0.000000e+00 : f32
      %17 = vector.broadcast %cst_9 : f32 to vector<1x128xf32>
      %c0_10 = arith.constant 0 : index
      %c0_11 = arith.constant 0 : index
      %18 = vector.load %arg12[%c0_10, %c0_11] : memref<1x128xf32, #tpu.memory_space<vmem>>, vector<1x128xf32>
      tpu.vector_store %arg12[%c0_10, %c0_11], %17 {strides = array<i32>} : memref<1x128xf32, #tpu.memory_space<vmem>>, vector<1x128xf32>,
      %cst_12 = arith.constant 0.000000e+00 : f32
      %19 = vector.broadcast %cst_12 : f32 to vector<1x128xf32>
      %c0_13 = arith.constant 0 : index
      %c0_14 = arith.constant 0 : index
      %20 = vector.load %arg13[%c0_13, %c0_14] : memref<1x128xf32, #tpu.memory_space<vmem>>, vector<1x128xf32>
      tpu.vector_store %arg13[%c0_13, %c0_14], %19 {strides = array<i32>} : memref<1x128xf32, #tpu.memory_space<vmem>>, vector<1x128xf32>,
      %cst_15 = arith.constant 0.000000e+00 : f32
      %21 = vector.broadcast %cst_15 : f32 to vector<1x64xf32>
      %c0_16 = arith.constant 0 : index
      %c0_17 = arith.constant 0 : index
      %22 = vector.load %arg14[%c0_16, %c0_17] : memref<1x64xf32, #tpu.memory_space<vmem>>, vector<1x64xf32>
      tpu.vector_store %arg14[%c0_16, %c0_17], %21 {strides = array<i32>} : memref<1x64xf32, #tpu.memory_space<vmem>>, vector<1x64xf32>,
      %cst_18 = arith.constant 0.000000e+00 : f32
      %23 = vector.broadcast %cst_18 : f32 to vector<1x64xf32>
      %c0_19 = arith.constant 0 : index
      %c0_20 = arith.constant 0 : index
      %24 = vector.load %arg15[%c0_19, %c0_20] : memref<1x64xf32, #tpu.memory_space<vmem>>, vector<1x64xf32>
      tpu.vector_store %arg15[%c0_19, %c0_20], %23 {strides = array<i32>} : memref<1x64xf32, #tpu.memory_space<vmem>>, vector<1x64xf32>,
    } else {
    }
    %c0 = arith.constant 0 : index
    %c0_2 = arith.constant 0 : index
    %5 = vector.load %arg2[%c0, %c0_2] : memref<8x32xf32, #tpu.memory_space<vmem>>, vector<8x32xf32>
    %c0_3 = arith.constant 0 : index
    %c0_4 = arith.constant 0 : index
    %6 = vector.load %arg3[%c0_3, %c0_4] : memref<32x128xf32, #tpu.memory_space<vmem>>, vector<32x128xf32>
    %cst = arith.constant dense<0.000000e+00> : vector<8x128xf32>
    %7 = tpu.matmul %5, %6, %cst {dimension_numbers = #tpu.dot_dimension_numbers<[1], [0], [0], [1], [0, 0, 1, 1], [], []>} : vector<8x32xf32>, vector<32x128xf32>, vector<8x128xf32> -> vector<8x128xf32>
    %c0_i32_5 = arith.constant 0 : i32
    %8 = arith.cmpi eq, %arg0, %c0_i32_5 : i32
    %9 = arith.extui %8 : i1 to i32
    %c0_i32_6 = arith.constant 0 : i32
    %10 = arith.cmpi ne, %9, %c0_i32_6 : i32
    scf.if %10 {
      %c0_9 = arith.constant 0 : index
      %c0_10 = arith.constant 0 : index
      %17 = vector.load %arg12[%c0_9, %c0_10] : memref<1x128xf32, #tpu.memory_space<vmem>>, vector<1x128xf32>
      %cst_11 = arith.constant dense<0.000000e+00> : vector<128xf32>
      %18 = vector.multi_reduction <add>, %7, %cst_11 [0] : vector<8x128xf32> to vector<128xf32>
      %19 = vector.shape_cast %18 : vector<128xf32> to vector<1x128xf32>
      %20 = arith.addf %17, %19 : vector<1x128xf32>
      %c0_12 = arith.constant 0 : index
      %c0_13 = arith.constant 0 : index
      %21 = vector.load %arg12[%c0_12, %c0_13] : memref<1x128xf32, #tpu.memory_space<vmem>>, vector<1x128xf32>
      tpu.vector_store %arg12[%c0_12, %c0_13], %20 {strides = array<i32>} : memref<1x128xf32, #tpu.memory_space<vmem>>, vector<1x128xf32>,
      %c0_14 = arith.constant 0 : index
      %c0_15 = arith.constant 0 : index
      %22 = vector.load %arg13[%c0_14, %c0_15] : memref<1x128xf32, #tpu.memory_space<vmem>>, vector<1x128xf32>
      %23 = arith.mulf %7, %7 : vector<8x128xf32>
      %cst_16 = arith.constant dense<0.000000e+00> : vector<128xf32>
      %24 = vector.multi_reduction <add>, %23, %cst_16 [0] : vector<8x128xf32> to vector<128xf32>
      %25 = vector.shape_cast %24 : vector<128xf32> to vector<1x128xf32>
      %26 = arith.addf %22, %25 : vector<1x128xf32>
      %c0_17 = arith.constant 0 : index
      %c0_18 = arith.constant 0 : index
      %27 = vector.load %arg13[%c0_17, %c0_18] : memref<1x128xf32, #tpu.memory_space<vmem>>, vector<1x128xf32>
      tpu.vector_store %arg13[%c0_17, %c0_18], %26 {strides = array<i32>} : memref<1x128xf32, #tpu.memory_space<vmem>>, vector<1x128xf32>,
    } else {
    }
    %c1_i32 = arith.constant 1 : i32
    %11 = arith.cmpi eq, %arg0, %c1_i32 : i32
    %12 = arith.extui %11 : i1 to i32
    %c0_i32_7 = arith.constant 0 : i32
    %13 = arith.cmpi ne, %12, %c0_i32_7 : i32
    scf.if %13 {
      %c0_9 = arith.constant 0 : index
      %c0_10 = arith.constant 0 : index
      %17 = vector.load %arg12[%c0_9, %c0_10] : memref<1x128xf32, #tpu.memory_space<vmem>>, vector<1x128xf32>
      %cst_11 = arith.constant 1.250000e-01 : f32
      %18 = vector.broadcast %cst_11 : f32 to vector<1x128xf32>
      %19 = arith.mulf %17, %18 : vector<1x128xf32>
      %c0_12 = arith.constant 0 : index
      %c0_13 = arith.constant 0 : index
      %20 = vector.load %arg13[%c0_12, %c0_13] : memref<1x128xf32, #tpu.memory_space<vmem>>, vector<1x128xf32>
      %cst_14 = arith.constant 1.250000e-01 : f32
      %21 = vector.broadcast %cst_14 : f32 to vector<1x128xf32>
      %22 = arith.mulf %20, %21 : vector<1x128xf32>
      %23 = arith.mulf %19, %19 : vector<1x128xf32>
      %24 = arith.subf %22, %23 : vector<1x128xf32>
      %cst_15 = arith.constant 0.000000e+00 : f32
      %25 = vector.broadcast %cst_15 : f32 to vector<1x128xf32>
      %26 = arith.maximumf %24, %25 : vector<1x128xf32>
      %c0_16 = arith.constant 0 : index
      %c0_17 = arith.constant 0 : index
      %27 = vector.load %arg4[%c0_16, %c0_17] : memref<1x128xf32, #tpu.memory_space<vmem>>, vector<1x128xf32>
      %cst_18 = arith.constant 9.99999974E-6 : f32
      %28 = vector.broadcast %cst_18 : f32 to vector<1x128xf32>
      %29 = arith.addf %26, %28 : vector<1x128xf32>
      %30 = math.rsqrt %29 : vector<1x128xf32>
      %31 = arith.mulf %27, %30 : vector<1x128xf32>
      %32 = vector.broadcast %19 : vector<1x128xf32> to vector<8x128xf32>
      %33 = arith.subf %7, %32 : vector<8x128xf32>
      %34 = vector.broadcast %31 : vector<1x128xf32> to vector<8x128xf32>
      %35 = arith.mulf %33, %34 : vector<8x128xf32>
      %c0_19 = arith.constant 0 : index
      %c0_20 = arith.constant 0 : index
      %36 = vector.load %arg5[%c0_19, %c0_20] : memref<1x128xf32, #tpu.memory_space<vmem>>, vector<1x128xf32>
      %37 = vector.broadcast %36 : vector<1x128xf32> to vector<8x128xf32>
      %38 = arith.addf %35, %37 : vector<8x128xf32>
      %cst_21 = arith.constant 0.000000e+00 : f32
      %39 = vector.broadcast %cst_21 : f32 to vector<8x128xf32>
      %40 = arith.maximumf %38, %39 : vector<8x128xf32>
      %c0_22 = arith.constant 0 : index
      %c0_23 = arith.constant 0 : index
      %41 = vector.load %arg6[%c0_22, %c0_23] : memref<128x64xf32, #tpu.memory_space<vmem>>, vector<128x64xf32>
      %cst_24 = arith.constant dense<0.000000e+00> : vector<8x64xf32>
      %42 = tpu.matmul %40, %41, %cst_24 {dimension_numbers = #tpu.dot_dimension_numbers<[1], [0], [0], [1], [0, 0, 1, 1], [], []>} : vector<8x128xf32>, vector<128x64xf32>, vector<8x64xf32> -> vector<8x64xf32>
      %c0_25 = arith.constant 0 : index
      %c0_26 = arith.constant 0 : index
      %43 = vector.load %arg14[%c0_25, %c0_26] : memref<1x64xf32, #tpu.memory_space<vmem>>, vector<1x64xf32>
      %cst_27 = arith.constant dense<0.000000e+00> : vector<64xf32>
      %44 = vector.multi_reduction <add>, %42, %cst_27 [0] : vector<8x64xf32> to vector<64xf32>
      %45 = vector.shape_cast %44 : vector<64xf32> to vector<1x64xf32>
      %46 = arith.addf %43, %45 : vector<1x64xf32>
      %c0_28 = arith.constant 0 : index
      %c0_29 = arith.constant 0 : index
      %47 = vector.load %arg14[%c0_28, %c0_29] : memref<1x64xf32, #tpu.memory_space<vmem>>, vector<1x64xf32>
      tpu.vector_store %arg14[%c0_28, %c0_29], %46 {strides = array<i32>} : memref<1x64xf32, #tpu.memory_space<vmem>>, vector<1x64xf32>,
      %c0_30 = arith.constant 0 : index
      %c0_31 = arith.constant 0 : index
      %48 = vector.load %arg15[%c0_30, %c0_31] : memref<1x64xf32, #tpu.memory_space<vmem>>, vector<1x64xf32>
      %49 = arith.mulf %42, %42 : vector<8x64xf32>
      %cst_32 = arith.constant dense<0.000000e+00> : vector<64xf32>
      %50 = vector.multi_reduction <add>, %49, %cst_32 [0] : vector<8x64xf32> to vector<64xf32>
      %51 = vector.shape_cast %50 : vector<64xf32> to vector<1x64xf32>
      %52 = arith.addf %48, %51 : vector<1x64xf32>
      %c0_33 = arith.constant 0 : index
      %c0_34 = arith.constant 0 : index
      %53 = vector.load %arg15[%c0_33, %c0_34] : memref<1x64xf32, #tpu.memory_space<vmem>>, vector<1x64xf32>
      tpu.vector_store %arg15[%c0_33, %c0_34], %52 {strides = array<i32>} : memref<1x64xf32, #tpu.memory_space<vmem>>, vector<1x64xf32>,
    } else {
    }
    %c2_i32 = arith.constant 2 : i32
    %14 = arith.cmpi eq, %arg0, %c2_i32 : i32
    %15 = arith.extui %14 : i1 to i32
    %c0_i32_8 = arith.constant 0 : i32
    %16 = arith.cmpi ne, %15, %c0_i32_8 : i32
    scf.if %16 {
      %c0_9 = arith.constant 0 : index
      %c0_10 = arith.constant 0 : index
      %17 = vector.load %arg12[%c0_9, %c0_10] : memref<1x128xf32, #tpu.memory_space<vmem>>, vector<1x128xf32>
      %cst_11 = arith.constant 1.250000e-01 : f32
      %18 = vector.broadcast %cst_11 : f32 to vector<1x128xf32>
      %19 = arith.mulf %17, %18 : vector<1x128xf32>
      %c0_12 = arith.constant 0 : index
      %c0_13 = arith.constant 0 : index
      %20 = vector.load %arg13[%c0_12, %c0_13] : memref<1x128xf32, #tpu.memory_space<vmem>>, vector<1x128xf32>
      %cst_14 = arith.constant 1.250000e-01 : f32
      %21 = vector.broadcast %cst_14 : f32 to vector<1x128xf32>
      %22 = arith.mulf %20, %21 : vector<1x128xf32>
      %23 = arith.mulf %19, %19 : vector<1x128xf32>
      %24 = arith.subf %22, %23 : vector<1x128xf32>
      %cst_15 = arith.constant 0.000000e+00 : f32
      %25 = vector.broadcast %cst_15 : f32 to vector<1x128xf32>
      %26 = arith.maximumf %24, %25 : vector<1x128xf32>
      %c0_16 = arith.constant 0 : index
      %c0_17 = arith.constant 0 : index
      %27 = vector.load %arg4[%c0_16, %c0_17] : memref<1x128xf32, #tpu.memory_space<vmem>>, vector<1x128xf32>
      %cst_18 = arith.constant 9.99999974E-6 : f32
      %28 = vector.broadcast %cst_18 : f32 to vector<1x128xf32>
      %29 = arith.addf %26, %28 : vector<1x128xf32>
      %30 = math.rsqrt %29 : vector<1x128xf32>
      %31 = arith.mulf %27, %30 : vector<1x128xf32>
      %32 = vector.broadcast %19 : vector<1x128xf32> to vector<8x128xf32>
      %33 = arith.subf %7, %32 : vector<8x128xf32>
      %34 = vector.broadcast %31 : vector<1x128xf32> to vector<8x128xf32>
      %35 = arith.mulf %33, %34 : vector<8x128xf32>
      %c0_19 = arith.constant 0 : index
      %c0_20 = arith.constant 0 : index
      %36 = vector.load %arg5[%c0_19, %c0_20] : memref<1x128xf32, #tpu.memory_space<vmem>>, vector<1x128xf32>
      %37 = vector.broadcast %36 : vector<1x128xf32> to vector<8x128xf32>
      %38 = arith.addf %35, %37 : vector<8x128xf32>
      %cst_21 = arith.constant 0.000000e+00 : f32
      %39 = vector.broadcast %cst_21 : f32 to vector<8x128xf32>
      %40 = arith.maximumf %38, %39 : vector<8x128xf32>
      %c0_22 = arith.constant 0 : index
      %c0_23 = arith.constant 0 : index
      %41 = vector.load %arg6[%c0_22, %c0_23] : memref<128x64xf32, #tpu.memory_space<vmem>>, vector<128x64xf32>
      %cst_24 = arith.constant dense<0.000000e+00> : vector<8x64xf32>
      %42 = tpu.matmul %40, %41, %cst_24 {dimension_numbers = #tpu.dot_dimension_numbers<[1], [0], [0], [1], [0, 0, 1, 1], [], []>} : vector<8x128xf32>, vector<128x64xf32>, vector<8x64xf32> -> vector<8x64xf32>
      %c0_25 = arith.constant 0 : index
      %c0_26 = arith.constant 0 : index
      %43 = vector.load %arg14[%c0_25, %c0_26] : memref<1x64xf32, #tpu.memory_space<vmem>>, vector<1x64xf32>
      %cst_27 = arith.constant 1.250000e-01 : f32
      %44 = vector.broadcast %cst_27 : f32 to vector<1x64xf32>
      %45 = arith.mulf %43, %44 : vector<1x64xf32>
      %c0_28 = arith.constant 0 : index
      %c0_29 = arith.constant 0 : index
      %46 = vector.load %arg15[%c0_28, %c0_29] : memref<1x64xf32, #tpu.memory_space<vmem>>, vector<1x64xf32>
      %cst_30 = arith.constant 1.250000e-01 : f32
      %47 = vector.broadcast %cst_30 : f32 to vector<1x64xf32>
      %48 = arith.mulf %46, %47 : vector<1x64xf32>
      %49 = arith.mulf %45, %45 : vector<1x64xf32>
      %50 = arith.subf %48, %49 : vector<1x64xf32>
      %cst_31 = arith.constant 0.000000e+00 : f32
      %51 = vector.broadcast %cst_31 : f32 to vector<1x64xf32>
      %52 = arith.maximumf %50, %51 : vector<1x64xf32>
      %c0_32 = arith.constant 0 : index
      %c0_33 = arith.constant 0 : index
      %53 = vector.load %arg7[%c0_32, %c0_33] : memref<1x64xf32, #tpu.memory_space<vmem>>, vector<1x64xf32>
      %cst_34 = arith.constant 9.99999974E-6 : f32
      %54 = vector.broadcast %cst_34 : f32 to vector<1x64xf32>
      %55 = arith.addf %52, %54 : vector<1x64xf32>
      %56 = math.rsqrt %55 : vector<1x64xf32>
      %57 = arith.mulf %53, %56 : vector<1x64xf32>
      %58 = vector.broadcast %45 : vector<1x64xf32> to vector<8x64xf32>
      %59 = arith.subf %42, %58 : vector<8x64xf32>
      %60 = vector.broadcast %57 : vector<1x64xf32> to vector<8x64xf32>
      %61 = arith.mulf %59, %60 : vector<8x64xf32>
      %c0_35 = arith.constant 0 : index
      %c0_36 = arith.constant 0 : index
      %62 = vector.load %arg8[%c0_35, %c0_36] : memref<1x64xf32, #tpu.memory_space<vmem>>, vector<1x64xf32>
      %63 = vector.broadcast %62 : vector<1x64xf32> to vector<8x64xf32>
      %64 = arith.addf %61, %63 : vector<8x64xf32>
      %cst_37 = arith.constant 0.000000e+00 : f32
      %65 = vector.broadcast %cst_37 : f32 to vector<8x64xf32>
      %66 = arith.maximumf %64, %65 : vector<8x64xf32>
      %c0_38 = arith.constant 0 : index
      %c0_39 = arith.constant 0 : index
      %67 = vector.load %arg9[%c0_38, %c0_39] : memref<64x128xf32, #tpu.memory_space<vmem>>, vector<64x128xf32>
      %cst_40 = arith.constant dense<0.000000e+00> : vector<8x128xf32>
      %68 = tpu.matmul %66, %67, %cst_40 {dimension_numbers = #tpu.dot_dimension_numbers<[1], [0], [0], [1], [0, 0, 1, 1], [], []>} : vector<8x64xf32>, vector<64x128xf32>, vector<8x128xf32> -> vector<8x128xf32>
      %c0_41 = arith.constant 0 : index
      %c0_42 = arith.constant 0 : index
      %69 = vector.load %arg10[%c0_41, %c0_42] : memref<1x128xf32, #tpu.memory_space<vmem>>, vector<1x128xf32>
      %70 = vector.broadcast %69 : vector<1x128xf32> to vector<8x128xf32>
      %71 = arith.addf %68, %70 : vector<8x128xf32>
      %c0_43 = arith.constant 0 : index
      %c0_44 = arith.constant 0 : index
      %72 = vector.load %arg11[%c0_43, %c0_44] : memref<8x128xf32, #tpu.memory_space<vmem>>, vector<8x128xf32>
      tpu.vector_store %arg11[%c0_43, %c0_44], %71 {strides = array<i32>} : memref<8x128xf32, #tpu.memory_space<vmem>>, vector<8x128xf32>,
    } else {
    }
    return
  }
  func.func @transform_0(%arg0: i32, %arg1: i32) -> (i32, i32) {
    %c0_i32 = arith.constant 0 : i32
    %c0_i32_0 = arith.constant 0 : i32
    return %arg1, %c0_i32 : i32, i32
  }
  func.func @transform_1(%arg0: i32, %arg1: i32) -> (i32, i32) {
    %c0_i32 = arith.constant 0 : i32
    %c0_i32_0 = arith.constant 0 : i32
    %c0_i32_1 = arith.constant 0 : i32
    return %c0_i32, %c0_i32_0 : i32, i32
  }
  func.func @transform_2(%arg0: i32, %arg1: i32) -> (i32, i32) {
    %c0_i32 = arith.constant 0 : i32
    %c0_i32_0 = arith.constant 0 : i32
    %c0_i32_1 = arith.constant 0 : i32
    return %c0_i32, %c0_i32_0 : i32, i32
  }
  func.func @transform_3(%arg0: i32, %arg1: i32) -> (i32, i32) {
    %c0_i32 = arith.constant 0 : i32
    %c0_i32_0 = arith.constant 0 : i32
    %c0_i32_1 = arith.constant 0 : i32
    return %c0_i32, %c0_i32_0 : i32, i32
  }
  func.func @transform_4(%arg0: i32, %arg1: i32) -> (i32, i32) {
    %c0_i32 = arith.constant 0 : i32
    %c0_i32_0 = arith.constant 0 : i32
    %c0_i32_1 = arith.constant 0 : i32
    return %c0_i32, %c0_i32_0 : i32, i32
  }
  func.func @transform_5(%arg0: i32, %arg1: i32) -> (i32, i32) {
    %c0_i32 = arith.constant 0 : i32
    %c0_i32_0 = arith.constant 0 : i32
    %c0_i32_1 = arith.constant 0 : i32
    return %c0_i32, %c0_i32_0 : i32, i32
  }
  func.func @transform_6(%arg0: i32, %arg1: i32) -> (i32, i32) {
    %c0_i32 = arith.constant 0 : i32
    %c0_i32_0 = arith.constant 0 : i32
    %c0_i32_1 = arith.constant 0 : i32
    return %c0_i32, %c0_i32_0 : i32, i32
  }
  func.func @transform_7(%arg0: i32, %arg1: i32) -> (i32, i32) {
    %c0_i32 = arith.constant 0 : i32
    %c0_i32_0 = arith.constant 0 : i32
    %c0_i32_1 = arith.constant 0 : i32
    return %c0_i32, %c0_i32_0 : i32, i32
  }
  func.func @transform_8(%arg0: i32, %arg1: i32) -> (i32, i32) {
    %c0_i32 = arith.constant 0 : i32
    %c0_i32_0 = arith.constant 0 : i32
    %c0_i32_1 = arith.constant 0 : i32
    return %c0_i32, %c0_i32_0 : i32, i32
  }
  func.func @transform_9(%arg0: i32, %arg1: i32) -> (i32, i32) {
    %c0_i32 = arith.constant 0 : i32
    %c0_i32_0 = arith.constant 0 : i32
    return %arg1, %c0_i32 : i32, i32
  }
}

</mosaic_0001>

<llo_original>
// kernel: tpu_custom_call.1
$region0: #{tpu_custom_call.1}
  #allocation0 [shape = 'u32[]', space=smem, size = 0x4, offset = 0x4, fixed_abs, tag = 'smem constant byte address 0x4 - core index']
  #allocation1 [shape = 'u32[144,128]{1,0:T(1,128)}', space=vmem, size = 0x12000, scoped, tag = 'internal scratch']
  #allocation2 [shape = 'f32[1,128]{1,0:T(1,128)}', space=vmem, size = 0x200, scoped, tag = 'scratch operand']
  #allocation3 [shape = 'f32[1,128]{1,0:T(1,128)}', space=vmem, size = 0x200, scoped, tag = 'scratch operand']
  #allocation4 [shape = 'f32[1,64]{1,0:T(1,128)}', space=vmem, size = 0x200, scoped, tag = 'scratch operand']
  #allocation5 [shape = 'f32[1,64]{1,0:T(1,128)}', space=vmem, size = 0x200, scoped, tag = 'scratch operand']
  %s0 = inlined_call_operand.vmem [shape: f32[8,32], index: 0, kind: input, shape index: {}]
  %s1 = inlined_call_operand.vmem [shape: f32[32,128], index: 1, kind: input, shape index: {}]
  %s2 = inlined_call_operand.vmem [shape: f32[1,128], index: 2, kind: input, shape index: {}]
  %s3 = inlined_call_operand.vmem [shape: f32[1,128], index: 3, kind: input, shape index: {}]
  %s4 = inlined_call_operand.vmem [shape: f32[128,64], index: 4, kind: input, shape index: {}]
  %s5 = inlined_call_operand.vmem [shape: f32[1,64], index: 5, kind: input, shape index: {}]
  %s6 = inlined_call_operand.vmem [shape: f32[1,64], index: 6, kind: input, shape index: {}]
  %s7 = inlined_call_operand.vmem [shape: f32[64,128], index: 7, kind: input, shape index: {}]
  %s8 = inlined_call_operand.vmem [shape: f32[1,128], index: 8, kind: input, shape index: {}]
  %s9 = inlined_call_operand.hbm [shape: f32[8,128], index: 9, kind: output, shape index: {}]
  %s10 = sld [smem:[#allocation0]]
  $region85: #{tpu_custom_call.1} parent=0
    _
  %s12 = ssub.s32 1, %s10
  %s13 = scalar_select 0, %s12, %s10
  $region1: #{tpu_custom_call.1} parent=0
    #allocation6 [shape = 'u8[4096]{0}', space=vmem, size = 0x1000, scoped, tag = 'output window, operand 0, single buffered']
    #allocation7 [shape = 's32[2]{0}', space=sflag, size = 0x8, scoped, tag = 'scoped memory for tpu_custom_call.1']
    %14 = vsyncpa [#allocation7], 0
    loop: start=0, step=1, limit=5
    $region2: #{tpu_custom_call.1} parent=1 // loop_pre_header
      _
    $region3: #{tpu_custom_call.1} parent=1 // loop_header
      %s16 = sphi 0, %s20
      %p17 = scmp.ge.s32.totalorder %s16, 5
      %s23 = sphi 0, %s35
      %s24 = sphi 0, %s31
      %s25 = sphi 0, %s23
      %s26 = sphi 0, %s24
      %s27 = sphi 0, %s25
      %s28 = sphi 0, %s26
      %s38 = sphi 0, %s40
      %s41 = sphi 0, %s38
      %s42 = sphi 0, %s41
      %s58 = sphi 0, %s42
      %s62 = sphi 0, %s62
      %s64 = sphi 0, %s62
      %s65 = sphi 0, %s64
      %s79 = sphi 0, %s65
      %s83 = sphi 0, %s83
      %s85 = sphi 0, %s83
      %s86 = sphi 0, %s85
      %s100 = sphi 0, %s86
      %s104 = sphi 0, %s104
      %s106 = sphi 0, %s104
      %s107 = sphi 0, %s106
      %s121 = sphi 0, %s107
      %s125 = sphi 0, %s125
      %s127 = sphi 0, %s125
      %s128 = sphi 0, %s127
      %s142 = sphi 0, %s128
      %s146 = sphi 0, %s146
      %s148 = sphi 0, %s146
      %s149 = sphi 0, %s148
      %s163 = sphi 0, %s149
      %s167 = sphi 0, %s167
      %s169 = sphi 0, %s167
      %s170 = sphi 0, %s169
      %s184 = sphi 0, %s170
      %s188 = sphi 0, %s188
      %s190 = sphi 0, %s188
      %s191 = sphi 0, %s190
      %s205 = sphi 0, %s191
      %s209 = sphi 0, %s209
      %s211 = sphi 0, %s209
      %s212 = sphi 0, %s211
      %s226 = sphi 0, %s212
      %s232 = sphi 0, %s234
      %s235 = sphi 0, %s232
      %s236 = sphi 0, %s235
      %s252 = sphi 0, %s236
    $region4: #{tpu_custom_call.1} parent=1 // loop_header_branch
      %19 = sbr.rel (%p17) target = $region8
    $region5: #{tpu_custom_call.1} parent=1 // loop_body
      %s21 = ssub.s32 %s16, 1
      %s22 = ssub.s32 %s16, 2
      %s29 = sadd.s32 1, %s24
      %p30 = scmp.ge.s32.totalorder %s29, 1
      %s31 = scalar_select %p30, 0, %s29
      %s32 = sadd.s32 1, %s23
      %s33 = scalar_select %p30, %s32, %s23
      %p34 = scmp.ge.s32.totalorder %s33, 3
      %s35 = scalar_select %p34, 0, %s33
      %s36 = ssub.s32 %s24, %s31
      %p37 = scmp.eq.s32.totalorder %s36, 0
      %s39 = sadd.s32 %s38, 1
      %s40 = scalar_select %p37, %s38, %s39
      %p43 = pneg %p37
      %p44 = scmp.eq.s32.totalorder %s16, 2
      %p45 = por %p43, %p44
      %p46 = scmp.ne.s32.totalorder %s38, %s41
      %p47 = scmp.eq.s32.totalorder %s16, 0
      %p48 = por %p46, %p47
      %p49 = scmp.ne.s32.totalorder %s38, %s41
      %p50 = scmp.eq.s32.totalorder %s21, 2
      %p51 = por %p49, %p50
      %p52 = scmp.ne.s32.totalorder %s41, %s42
      %p53 = scmp.eq.s32.totalorder %s21, 0
      %p54 = por %p52, %p53
      %p55 = scmp.ne.s32.totalorder %s41, %s42
      %p56 = scmp.eq.s32.totalorder %s22, 2
      %p57 = por %p55, %p56
      %p59 = scmp.ne.s32.totalorder %s42, %s58
      %p60 = scmp.eq.s32.totalorder %s22, 0
      %p61 = por %p59, %p60
      %s63 = sadd.s32 %s62, 1
      %p66 = scmp.eq.s32.totalorder %s16, 2
      %p67 = scmp.ne.s32.totalorder %s62, %s64
      %p68 = scmp.eq.s32.totalorder %s16, 0
      %p69 = por %p67, %p68
      %p70 = scmp.ne.s32.totalorder %s62, %s64
      %p71 = scmp.eq.s32.totalorder %s21, 2
      %p72 = por %p70, %p71
      %p73 = scmp.ne.s32.totalorder %s64, %s65
      %p74 = scmp.eq.s32.totalorder %s21, 0
      %p75 = por %p73, %p74
      %p76 = scmp.ne.s32.totalorder %s64, %s65
      %p77 = scmp.eq.s32.totalorder %s22, 2
      %p78 = por %p76, %p77
      %p80 = scmp.ne.s32.totalorder %s65, %s79
      %p81 = scmp.eq.s32.totalorder %s22, 0
      %p82 = por %p80, %p81
      %s84 = sadd.s32 %s83, 1
      %p87 = scmp.eq.s32.totalorder %s16, 2
      %p88 = scmp.ne.s32.totalorder %s83, %s85
      %p89 = scmp.eq.s32.totalorder %s16, 0
      %p90 = por %p88, %p89
      %p91 = scmp.ne.s32.totalorder %s83, %s85
      %p92 = scmp.eq.s32.totalorder %s21, 2
      %p93 = por %p91, %p92
      %p94 = scmp.ne.s32.totalorder %s85, %s86
      %p95 = scmp.eq.s32.totalorder %s21, 0
      %p96 = por %p94, %p95
      %p97 = scmp.ne.s32.totalorder %s85, %s86
      %p98 = scmp.eq.s32.totalorder %s22, 2
      %p99 = por %p97, %p98
      %p101 = scmp.ne.s32.totalorder %s86, %s100
      %p102 = scmp.eq.s32.totalorder %s22, 0
      %p103 = por %p101, %p102
      %s105 = sadd.s32 %s104, 1
      %p108 = scmp.eq.s32.totalorder %s16, 2
      %p109 = scmp.ne.s32.totalorder %s104, %s106
      %p110 = scmp.eq.s32.totalorder %s16, 0
      %p111 = por %p109, %p110
      %p112 = scmp.ne.s32.totalorder %s104, %s106
      %p113 = scmp.eq.s32.totalorder %s21, 2
      %p114 = por %p112, %p113
      %p115 = scmp.ne.s32.totalorder %s106, %s107
      %p116 = scmp.eq.s32.totalorder %s21, 0
      %p117 = por %p115, %p116
      %p118 = scmp.ne.s32.totalorder %s106, %s107
      %p119 = scmp.eq.s32.totalorder %s22, 2
      %p120 = por %p118, %p119
      %p122 = scmp.ne.s32.totalorder %s107, %s121
      %p123 = scmp.eq.s32.totalorder %s22, 0
      %p124 = por %p122, %p123
      %s126 = sadd.s32 %s125, 1
      %p129 = scmp.eq.s32.totalorder %s16, 2
      %p130 = scmp.ne.s32.totalorder %s125, %s127
      %p131 = scmp.eq.s32.totalorder %s16, 0
      %p132 = por %p130, %p131
      %p133 = scmp.ne.s32.totalorder %s125, %s127
      %p134 = scmp.eq.s32.totalorder %s21, 2
      %p135 = por %p133, %p134
      %p136 = scmp.ne.s32.totalorder %s127, %s128
      %p137 = scmp.eq.s32.totalorder %s21, 0
      %p138 = por %p136, %p137
      %p139 = scmp.ne.s32.totalorder %s127, %s128
      %p140 = scmp.eq.s32.totalorder %s22, 2
      %p141 = por %p139, %p140
      %p143 = scmp.ne.s32.totalorder %s128, %s142
      %p144 = scmp.eq.s32.totalorder %s22, 0
      %p145 = por %p143, %p144
      %s147 = sadd.s32 %s146, 1
      %p150 = scmp.eq.s32.totalorder %s16, 2
      %p151 = scmp.ne.s32.totalorder %s146, %s148
      %p152 = scmp.eq.s32.totalorder %s16, 0
      %p153 = por %p151, %p152
      %p154 = scmp.ne.s32.totalorder %s146, %s148
      %p155 = scmp.eq.s32.totalorder %s21, 2
      %p156 = por %p154, %p155
      %p157 = scmp.ne.s32.totalorder %s148, %s149
      %p158 = scmp.eq.s32.totalorder %s21, 0
      %p159 = por %p157, %p158
      %p160 = scmp.ne.s32.totalorder %s148, %s149
      %p161 = scmp.eq.s32.totalorder %s22, 2
      %p162 = por %p160, %p161
      %p164 = scmp.ne.s32.totalorder %s149, %s163
      %p165 = scmp.eq.s32.totalorder %s22, 0
      %p166 = por %p164, %p165
      %s168 = sadd.s32 %s167, 1
      %p171 = scmp.eq.s32.totalorder %s16, 2
      %p172 = scmp.ne.s32.totalorder %s167, %s169
      %p173 = scmp.eq.s32.totalorder %s16, 0
      %p174 = por %p172, %p173
      %p175 = scmp.ne.s32.totalorder %s167, %s169
      %p176 = scmp.eq.s32.totalorder %s21, 2
      %p177 = por %p175, %p176
      %p178 = scmp.ne.s32.totalorder %s169, %s170
      %p179 = scmp.eq.s32.totalorder %s21, 0
      %p180 = por %p178, %p179
      %p181 = scmp.ne.s32.totalorder %s169, %s170
      %p182 = scmp.eq.s32.totalorder %s22, 2
      %p183 = por %p181, %p182
      %p185 = scmp.ne.s32.totalorder %s170, %s184
      %p186 = scmp.eq.s32.totalorder %s22, 0
      %p187 = por %p185, %p186
      %s189 = sadd.s32 %s188, 1
      %p192 = scmp.eq.s32.totalorder %s16, 2
      %p193 = scmp.ne.s32.totalorder %s188, %s190
      %p194 = scmp.eq.s32.totalorder %s16, 0
      %p195 = por %p193, %p194
      %p196 = scmp.ne.s32.totalorder %s188, %s190
      %p197 = scmp.eq.s32.totalorder %s21, 2
      %p198 = por %p196, %p197
      %p199 = scmp.ne.s32.totalorder %s190, %s191
      %p200 = scmp.eq.s32.totalorder %s21, 0
      %p201 = por %p199, %p200
      %p202 = scmp.ne.s32.totalorder %s190, %s191
      %p203 = scmp.eq.s32.totalorder %s22, 2
      %p204 = por %p202, %p203
      %p206 = scmp.ne.s32.totalorder %s191, %s205
      %p207 = scmp.eq.s32.totalorder %s22, 0
      %p208 = por %p206, %p207
      %s210 = sadd.s32 %s209, 1
      %p213 = scmp.eq.s32.totalorder %s16, 2
      %p214 = scmp.ne.s32.totalorder %s209, %s211
      %p215 = scmp.eq.s32.totalorder %s16, 0
      %p216 = por %p214, %p215
      %p217 = scmp.ne.s32.totalorder %s209, %s211
      %p218 = scmp.eq.s32.totalorder %s21, 2
      %p219 = por %p217, %p218
      %p220 = scmp.ne.s32.totalorder %s211, %s212
      %p221 = scmp.eq.s32.totalorder %s21, 0
      %p222 = por %p220, %p221
      %p223 = scmp.ne.s32.totalorder %s211, %s212
      %p224 = scmp.eq.s32.totalorder %s22, 2
      %p225 = por %p223, %p224
      %p227 = scmp.ne.s32.totalorder %s212, %s226
      %p228 = scmp.eq.s32.totalorder %s22, 0
      %p229 = por %p227, %p228
      %s230 = ssub.s32 %s24, %s31
      %p231 = scmp.eq.s32.totalorder %s230, 0
      %s233 = sadd.s32 %s232, 1
      %s234 = scalar_select %p231, %s232, %s233
      %p237 = pneg %p231
      %p238 = scmp.eq.s32.totalorder %s16, 2
      %p239 = por %p237, %p238
      %p240 = scmp.ne.s32.totalorder %s232, %s235
      %p241 = scmp.eq.s32.totalorder %s16, 0
      %p242 = por %p240, %p241
      %p243 = scmp.ne.s32.totalorder %s232, %s235
      %p244 = scmp.eq.s32.totalorder %s21, 2
      %p245 = por %p243, %p244
      %p246 = scmp.ne.s32.totalorder %s235, %s236
      %p247 = scmp.eq.s32.totalorder %s21, 0
      %p248 = por %p246, %p247
      %p249 = scmp.ne.s32.totalorder %s235, %s236
      %p250 = scmp.eq.s32.totalorder %s22, 2
      %p251 = por %p249, %p250
      %p253 = scmp.ne.s32.totalorder %s236, %s252
      %p254 = scmp.eq.s32.totalorder %s22, 0
      %p255 = por %p253, %p254
      %p256 = scmp.le.s32.totalorder 1, %s16
      %p257 = scmp.lt.s32.totalorder %s16, 4
      %p258 = pnand %p256, %p257
      %p259 = pneg %p258
      // Predicated region
      $region9: #{tpu_custom_call.1} parent=5 // pred_check
        _
      $region10: #{tpu_custom_call.1} parent=5 // pred_check_branch
        %261 = sbr.rel (%p258) target = $region12
      $region11: #{tpu_custom_call.1} parent=5 // pred_region
        %s262 = ssub.s32 %s16, 1
        // Predicated region
        $region13: #{tpu_custom_call.1} parent=11 // pred_check
          %p263 = pneg %p54
        $region14: #{tpu_custom_call.1} parent=11 // pred_check_branch
          %265 = sbr.rel (%p263) target = $region16
        $region15: #{tpu_custom_call.1} parent=11 // pred_region
          %p266 = scmp.lt.s32.totalorder %s26, 0
          %s267 = scalar_select %p266, %s26, 0
          %s268 = smul.addr %s267, 8
          %s269 = scalar_lea.vmem %s0, %s268
        $region16: #{tpu_custom_call.1} parent=11 // pred_fallthru
          _
        // Predicated region
        $region17: #{tpu_custom_call.1} parent=11 // pred_check
          %p270 = pneg %p75
        $region18: #{tpu_custom_call.1} parent=11 // pred_check_branch
          %272 = sbr.rel (%p270) target = $region20
        $region19: #{tpu_custom_call.1} parent=11 // pred_region
          _
        $region20: #{tpu_custom_call.1} parent=11 // pred_fallthru
          _
        // Predicated region
        $region21: #{tpu_custom_call.1} parent=11 // pred_check
          %p273 = pneg %p96
        $region22: #{tpu_custom_call.1} parent=11 // pred_check_branch
          %275 = sbr.rel (%p273) target = $region24
        $region23: #{tpu_custom_call.1} parent=11 // pred_region
          _
        $region24: #{tpu_custom_call.1} parent=11 // pred_fallthru
          _
        // Predicated region
        $region25: #{tpu_custom_call.1} parent=11 // pred_check
          %p276 = pneg %p117
        $region26: #{tpu_custom_call.1} parent=11 // pred_check_branch
          %278 = sbr.rel (%p276) target = $region28
        $region27: #{tpu_custom_call.1} parent=11 // pred_region
          _
        $region28: #{tpu_custom_call.1} parent=11 // pred_fallthru
          _
        // Predicated region
        $region29: #{tpu_custom_call.1} parent=11 // pred_check
          %p279 = pneg %p138
        $region30: #{tpu_custom_call.1} parent=11 // pred_check_branch
          %281 = sbr.rel (%p279) target = $region32
        $region31: #{tpu_custom_call.1} parent=11 // pred_region
          _
        $region32: #{tpu_custom_call.1} parent=11 // pred_fallthru
          _
        // Predicated region
        $region33: #{tpu_custom_call.1} parent=11 // pred_check
          %p282 = pneg %p159
        $region34: #{tpu_custom_call.1} parent=11 // pred_check_branch
          %284 = sbr.rel (%p282) target = $region36
        $region35: #{tpu_custom_call.1} parent=11 // pred_region
          _
        $region36: #{tpu_custom_call.1} parent=11 // pred_fallthru
          _
        // Predicated region
        $region37: #{tpu_custom_call.1} parent=11 // pred_check
          %p285 = pneg %p180
        $region38: #{tpu_custom_call.1} parent=11 // pred_check_branch
          %287 = sbr.rel (%p285) target = $region40
        $region39: #{tpu_custom_call.1} parent=11 // pred_region
          _
        $region40: #{tpu_custom_call.1} parent=11 // pred_fallthru
          _
        // Predicated region
        $region41: #{tpu_custom_call.1} parent=11 // pred_check
          %p288 = pneg %p201
        $region42: #{tpu_custom_call.1} parent=11 // pred_check_branch
          %290 = sbr.rel (%p288) target = $region44
        $region43: #{tpu_custom_call.1} parent=11 // pred_region
          _
        $region44: #{tpu_custom_call.1} parent=11 // pred_fallthru
          _
        // Predicated region
        $region45: #{tpu_custom_call.1} parent=11 // pred_check
          %p291 = pneg %p222
        $region46: #{tpu_custom_call.1} parent=11 // pred_check_branch
          %293 = sbr.rel (%p291) target = $region48
        $region47: #{tpu_custom_call.1} parent=11 // pred_region
          _
        $region48: #{tpu_custom_call.1} parent=11 // pred_fallthru
          _
      $region12: #{tpu_custom_call.1} parent=5 // pred_fallthru
        _
      %p294 = scmp.lt.s32.totalorder %s16, 3
      // Predicated region
      $region49: #{tpu_custom_call.1} parent=5 // pred_check
        %p295 = pneg %p294
      $region50: #{tpu_custom_call.1} parent=5 // pred_check_branch
        %297 = sbr.rel (%p295) target = $region52
      $region51: #{tpu_custom_call.1} parent=5 // pred_region
        _
      $region52: #{tpu_custom_call.1} parent=5 // pred_fallthru
        _
      %p298 = scmp.le.s32.totalorder 1, %s16
      %p299 = scmp.lt.s32.totalorder %s16, 4
      %p300 = pnand %p298, %p299
      %p301 = pneg %p300
      // Predicated region
      $region53: #{tpu_custom_call.1} parent=5 // pred_check
        _
      $region54: #{tpu_custom_call.1} parent=5 // pred_check_branch
        %303 = sbr.rel (%p300) target = $region56
      $region55: #{tpu_custom_call.1} parent=5 // pred_region
        %s304 = ssub.s32 %s16, 1
        %p305 = scmp.lt.s32.totalorder %s26, 0
        %s306 = scalar_select %p305, %s26, 0
        %s307 = smul.addr %s306, 8
        %s308 = scalar_lea.vmem %s0, %s307
        %p309 = pneg %p54
        %p310 = pneg %p51
        %p311 = pneg %p75
        %p312 = pneg %p72
        %p313 = pneg %p96
        %p314 = pneg %p93
        %p315 = pneg %p117
        %p316 = pneg %p114
        %p317 = pneg %p138
        %p318 = pneg %p135
        %p319 = pneg %p159
        %p320 = pneg %p156
        %p321 = pneg %p180
        %p322 = pneg %p177
        %p323 = pneg %p201
        %p324 = pneg %p198
        %p325 = pneg %p222
        %p326 = pneg %p219
        %p327 = pneg %p248
        %p328 = pneg %p245
        %p329 = scmp.lt.s32.totalorder %s26, 0
        %s330 = scalar_select %p329, %s26, 0
        %s331 = smul.addr %s330, 8
        %s332 = scalar_lea.vmem %s0, %s331
        %p333 = scmp.eq.s32.totalorder %s25, 0
        %p334 = scmp.eq.s32.totalorder %s26, 0
        %p335 = pnand %p333, %p334
        %p336 = pneg %p335
        // Predicated region
        $region57: #{tpu_custom_call.1} parent=55 // pred_check
          _
        $region58: #{tpu_custom_call.1} parent=55 // pred_check_branch
          %338 = sbr.rel (%p335) target = $region60
        $region59: #{tpu_custom_call.1} parent=55 // pred_region
          %339 = vst [vmem:[#allocation2] sm:$0x1] 0.0
          %340 = vst [vmem:[#allocation3] sm:$0x1] 0.0
          %vm341 = vcmask 516096
          %342 = vst.msk [vmem:[#allocation4] sm:$0x1] %vm341, 0.0
          %343 = vst.msk [vmem:[#allocation5] sm:$0x1] %vm341, 0.0
        $region60: #{tpu_custom_call.1} parent=55 // pred_fallthru
          _
        %v344 = vld [vmem:[%s332] sm:$0xff]
        %v345 = vld [vmem:[%s1] sm:$0xff]
        %v346 = vld [vmem:[%s1 + $0x8] sm:$0xff]
        %v347 = vld [vmem:[%s1 + $0x10] sm:$0xff]
        %v348 = vld [vmem:[%s1 + $0x18] sm:$0xff]
        %vm349 = vcmask 261120
        %v351 = vsel %vm349, %v344, 0
        %353 = vmatprep.subr.mxu0 0.0
        %354 = vmatpush1.msra.mxu0 %v345
        %355 = vmatprep.subr.mxu0 0.0
        %356 = vmatpush1.msra.mxu0 %v346
        %357 = vmatprep.subr.mxu0 0.0
        %358 = vmatpush1.msra.mxu0 %v347
        %359 = vmatprep.subr.mxu0 0.0
        %360 = vmatpush1.msra.mxu0 %v348
        %361 = vmatprep.subr.mxu0 0.0
        %362 = vmatpush1.msra.mxu0 0.0
        %363 = vmatprep.subr.mxu0 0.0
        %364 = vmatpush1.msra.mxu0 0.0
        %365 = vmatprep.subr.mxu0 0.0
        %366 = vmatpush1.msra.mxu0 0.0
        %367 = vmatprep.subr.mxu0 0.0
        %368 = vmatpush1.msra.mxu0 0.0
        %369 = vmatprep.subr.mxu0 0.0
        %370 = vmatpush1.msra.mxu0 0.0
        %371 = vmatprep.subr.mxu0 0.0
        %372 = vmatpush1.msra.mxu0 0.0
        %373 = vmatprep.subr.mxu0 0.0
        %374 = vmatpush1.msra.mxu0 0.0
        %375 = vmatprep.subr.mxu0 0.0
        %376 = vmatpush1.msra.mxu0 0.0
        %377 = vmatprep.subr.mxu0 0.0
        %378 = vmatpush1.msra.mxu0 0.0
        %379 = vmatprep.subr.mxu0 0.0
        %380 = vmatpush1.msra.mxu0 0.0
        %381 = vmatprep.subr.mxu0 0.0
        %382 = vmatpush1.msra.mxu0 0.0
        %383 = vmatprep.subr.mxu0 0.0
        %384 = vmatpush1.msra.mxu0 0.0
        %385 = vmatprep.subr.mxu0 0.0
        %386 = vmatpush1.msra.mxu0 0.0
        %387 = vmatprep.subr.mxu0 0.0
        %388 = vmatpush1.msra.mxu0 0.0
        %389 = vmatprep.subr.mxu0 0.0
        %390 = vmatpush1.msra.mxu0 0.0
        %391 = vmatprep.subr.mxu0 0.0
        %392 = vmatpush1.msra.mxu0 0.0
        %393 = vmatprep.subr.mxu0 0.0
        %394 = vmatpush1.msra.mxu0 0.0
        %395 = vmatprep.subr.mxu0 0.0
        %396 = vmatpush1.msra.mxu0 0.0
        %397 = vmatprep.subr.mxu0 0.0
        %398 = vmatpush1.msra.mxu0 0.0
        %399 = vmatprep.subr.mxu0 0.0
        %400 = vmatpush1.msra.mxu0 0.0
        %401 = vmatprep.subr.mxu0 0.0
        %402 = vmatpush1.msra.mxu0 0.0
        %403 = vmatprep.subr.mxu0 0.0
        %404 = vmatpush1.msra.mxu0 0.0
        %405 = vmatprep.subr.mxu0 0.0
        %406 = vmatpush1.msra.mxu0 0.0
        %407 = vmatprep.subr.mxu0 0.0
        %408 = vmatpush1.msra.mxu0 0.0
        %409 = vmatprep.subr.mxu0 0.0
        %410 = vmatpush1.msra.mxu0 0.0
        %411 = vmatprep.subr.mxu0 0.0
        %412 = vmatpush1.msra.mxu0 0.0
        %413 = vmatprep.subr.mxu0 0.0
        %414 = vmatpush1.msra.mxu0 0.0
        %415 = vmatprep.subr.mxu0 0.0
        %416 = vmatpush1.msra.mxu0 0.0
        %417 = vmatprep.mubr.f32.mxu0 0.0
        %418 = vmatmul.mubr.f32.gmra.mrb[0].mxu0 %v351
        %v419 = vpop.f32.mrb[0].mxu0
        %v420 = vadd.f32 0.0, %v419
        %v421 = vpop.f32.mrb[0].mxu0
        %422 = vdwg.mxu0
        // Predicated region
        $region61: #{tpu_custom_call.1} parent=55 // pred_check
          %p423 = pneg %p333
        $region62: #{tpu_custom_call.1} parent=55 // pred_check_branch
          %425 = sbr.rel (%p423) target = $region64
        $region63: #{tpu_custom_call.1} parent=55 // pred_region
          %v426 = vld [vmem:[#allocation2] sm:$0x1]
          %v427 = vrot.slane %v420, 4
          %v428 = vadd.f32 %v420, %v427
          %v429 = vrot.slane %v428, 2
          %v430 = vadd.f32 %v428, %v429
          %v431 = vrot.slane %v430, 1
          %v432 = vadd.f32 %v430, %v431
          %v433 = vadd.f32 %v426, %v432
          %434 = vst [vmem:[#allocation2] sm:$0x1] %v433
          %v435 = vld [vmem:[#allocation3] sm:$0x1]
          %v436 = vmul.f32 %v420, %v420
          %v437 = vrot.slane %v436, 4
          %v438 = vadd.f32 %v436, %v437
          %v439 = vrot.slane %v438, 2
          %v440 = vadd.f32 %v438, %v439
          %v441 = vrot.slane %v440, 1
          %v442 = vadd.f32 %v440, %v441
          %v443 = vadd.f32 %v435, %v442
          %444 = vst [vmem:[#allocation3] sm:$0x1] %v443
        $region64: #{tpu_custom_call.1} parent=55 // pred_fallthru
          _
        %p445 = scmp.eq.s32.totalorder %s25, 1
        // Predicated region
        $region65: #{tpu_custom_call.1} parent=55 // pred_check
          %p446 = pneg %p445
        $region66: #{tpu_custom_call.1} parent=55 // pred_check_branch
          %448 = sbr.rel (%p446) target = $region68
        $region67: #{tpu_custom_call.1} parent=55 // pred_region
          %v449 = vld [vmem:[#allocation2] sm:$0x1]
          %v450 = vmul.f32 %v449, 0.125
          %v451 = vld [vmem:[#allocation3] sm:$0x1]
          %v452 = vmul.f32 %v451, 0.125
          %v453 = vmul.f32 %v450, %v450
          %v454 = vsub.f32 %v452, %v453
          %v455 = vmax.f32 %v454, 0.0
          %v456 = vld [vmem:[%s2] sm:$0x1]
          %v457 = vadd.f32 %v455, 1e-05
          %v458 = vrsqrt.pop %v457
          %v459 = vmul.f32 %v456, %v458
          %v461 = vlaneseq
          %v462 = vshrl.u32 %v461, 7
          %v463 = vsub.s32 0, %v462
          %v464 = vrot.slane %v450, %v463
          %v466 = vsub.f32 %v420, %v464
          %v468 = vlaneseq
          %v469 = vshrl.u32 %v468, 7
          %v470 = vsub.s32 0, %v469
          %v471 = vrot.slane %v459, %v470
          %v473 = vmul.f32 %v466, %v471
          %v474 = vld [vmem:[%s3] sm:$0x1]
          %v476 = vlaneseq
          %v477 = vshrl.u32 %v476, 7
          %v478 = vsub.s32 0, %v477
          %v479 = vrot.slane %v474, %v478
          %v481 = vadd.f32 %v473, %v479
          %v482 = vmax.f32 %v481, 0.0
          %v483 = vld [vmem:[%s4] sm:$0xff]
          %v484 = vld [vmem:[%s4 + $0x8] sm:$0xff]
          %v485 = vld [vmem:[%s4 + $0x10] sm:$0xff]
          %v486 = vld [vmem:[%s4 + $0x18] sm:$0xff]
          %v487 = vld [vmem:[%s4 + $0x20] sm:$0xff]
          %v488 = vld [vmem:[%s4 + $0x28] sm:$0xff]
          %v489 = vld [vmem:[%s4 + $0x30] sm:$0xff]
          %v490 = vld [vmem:[%s4 + $0x38] sm:$0xff]
          %v491 = vld [vmem:[%s4 + $0x40] sm:$0xff]
          %v492 = vld [vmem:[%s4 + $0x48] sm:$0xff]
          %v493 = vld [vmem:[%s4 + $0x50] sm:$0xff]
          %v494 = vld [vmem:[%s4 + $0x58] sm:$0xff]
          %v495 = vld [vmem:[%s4 + $0x60] sm:$0xff]
          %v496 = vld [vmem:[%s4 + $0x68] sm:$0xff]
          %v497 = vld [vmem:[%s4 + $0x70] sm:$0xff]
          %v498 = vld [vmem:[%s4 + $0x78] sm:$0xff]
          %499 = vmatprep.subr.mxu0 0.0
          %500 = vmatpush1.msra.mxu0 %v483
          %501 = vmatprep.subr.mxu0 0.0
          %502 = vmatpush1.msra.mxu0 %v484
          %503 = vmatprep.subr.mxu0 0.0
          %504 = vmatpush1.msra.mxu0 %v485
          %505 = vmatprep.subr.mxu0 0.0
          %506 = vmatpush1.msra.mxu0 %v486
          %507 = vmatprep.subr.mxu0 0.0
          %508 = vmatpush1.msra.mxu0 %v487
          %509 = vmatprep.subr.mxu0 0.0
          %510 = vmatpush1.msra.mxu0 %v488
          %511 = vmatprep.subr.mxu0 0.0
          %512 = vmatpush1.msra.mxu0 %v489
          %513 = vmatprep.subr.mxu0 0.0
          %514 = vmatpush1.msra.mxu0 %v490
          %515 = vmatprep.subr.mxu0 0.0
          %516 = vmatpush1.msra.mxu0 %v491
          %517 = vmatprep.subr.mxu0 0.0
          %518 = vmatpush1.msra.mxu0 %v492
          %519 = vmatprep.subr.mxu0 0.0
          %520 = vmatpush1.msra.mxu0 %v493
          %521 = vmatprep.subr.mxu0 0.0
          %522 = vmatpush1.msra.mxu0 %v494
          %523 = vmatprep.subr.mxu0 0.0
          %524 = vmatpush1.msra.mxu0 %v495
          %525 = vmatprep.subr.mxu0 0.0
          %526 = vmatpush1.msra.mxu0 %v496
          %527 = vmatprep.subr.mxu0 0.0
          %528 = vmatpush1.msra.mxu0 %v497
          %529 = vmatprep.subr.mxu0 0.0
          %530 = vmatpush1.msra.mxu0 %v498
          %531 = vmatprep.subr.mxu0 0.0
          %532 = vmatpush1.msra.mxu0 0.0
          %533 = vmatprep.subr.mxu0 0.0
          %534 = vmatpush1.msra.mxu0 0.0
          %535 = vmatprep.subr.mxu0 0.0
          %536 = vmatpush1.msra.mxu0 0.0
          %537 = vmatprep.subr.mxu0 0.0
          %538 = vmatpush1.msra.mxu0 0.0
          %539 = vmatprep.subr.mxu0 0.0
          %540 = vmatpush1.msra.mxu0 0.0
          %541 = vmatprep.subr.mxu0 0.0
          %542 = vmatpush1.msra.mxu0 0.0
          %543 = vmatprep.subr.mxu0 0.0
          %544 = vmatpush1.msra.mxu0 0.0
          %545 = vmatprep.subr.mxu0 0.0
          %546 = vmatpush1.msra.mxu0 0.0
          %547 = vmatprep.subr.mxu0 0.0
          %548 = vmatpush1.msra.mxu0 0.0
          %549 = vmatprep.subr.mxu0 0.0
          %550 = vmatpush1.msra.mxu0 0.0
          %551 = vmatprep.subr.mxu0 0.0
          %552 = vmatpush1.msra.mxu0 0.0
          %553 = vmatprep.subr.mxu0 0.0
          %554 = vmatpush1.msra.mxu0 0.0
          %555 = vmatprep.subr.mxu0 0.0
          %556 = vmatpush1.msra.mxu0 0.0
          %557 = vmatprep.subr.mxu0 0.0
          %558 = vmatpush1.msra.mxu0 0.0
          %559 = vmatprep.subr.mxu0 0.0
          %560 = vmatpush1.msra.mxu0 0.0
          %561 = vmatprep.subr.mxu0 0.0
          %562 = vmatpush1.msra.mxu0 0.0
          %563 = vmatprep.mubr.f32.mxu0 0.0
          %564 = vmatmul.mubr.f32.gmra.mrb[0].mxu0 %v482
          %v565 = vpop.f32.mrb[0].mxu0
          %v566 = vadd.f32 0.0, %v565
          %v567 = vpop.f32.mrb[0].mxu0
          %568 = vdwg.mxu0
          %v569 = vld [vmem:[#allocation4] sm:$0x1]
          %vm570 = vcmask 523264
          %v571 = vsel %vm570, %v566, 0.0
          %v572 = vrot.slane %v571, 4
          %v573 = vadd.f32 %v571, %v572
          %v574 = vrot.slane %v573, 2
          %v575 = vadd.f32 %v573, %v574
          %v576 = vrot.slane %v575, 1
          %v577 = vadd.f32 %v575, %v576
          %v578 = vadd.f32 %v569, %v577
          %vm579 = vcmask 516096
          %580 = vst.msk [vmem:[#allocation4] sm:$0x1] %vm579, %v578
          %v581 = vld [vmem:[#allocation5] sm:$0x1]
          %v582 = vmul.f32 %v566, %v566
          %v583 = vsel %vm570, %v582, 0.0
          %v584 = vrot.slane %v583, 4
          %v585 = vadd.f32 %v583, %v584
          %v586 = vrot.slane %v585, 2
          %v587 = vadd.f32 %v585, %v586
          %v588 = vrot.slane %v587, 1
          %v589 = vadd.f32 %v587, %v588
          %v590 = vadd.f32 %v581, %v589
          %591 = vst.msk [vmem:[#allocation5] sm:$0x1] %vm579, %v590
        $region68: #{tpu_custom_call.1} parent=55 // pred_fallthru
          _
        %p592 = scmp.eq.s32.totalorder %s25, 2
        // Predicated region
        $region69: #{tpu_custom_call.1} parent=55 // pred_check
          %p593 = pneg %p592
        $region70: #{tpu_custom_call.1} parent=55 // pred_check_branch
          %595 = sbr.rel (%p593) target = $region72
        $region71: #{tpu_custom_call.1} parent=55 // pred_region
          %v596 = vld [vmem:[#allocation2] sm:$0x1]
          %v597 = vmul.f32 %v596, 0.125
          %v598 = vld [vmem:[#allocation3] sm:$0x1]
          %v599 = vmul.f32 %v598, 0.125
          %v600 = vmul.f32 %v597, %v597
          %v601 = vsub.f32 %v599, %v600
          %v602 = vmax.f32 %v601, 0.0
          %v603 = vld [vmem:[%s2] sm:$0x1]
          %v604 = vadd.f32 %v602, 1e-05
          %v605 = vrsqrt.pop %v604
          %v606 = vmul.f32 %v603, %v605
          %v608 = vlaneseq
          %v609 = vshrl.u32 %v608, 7
          %v610 = vsub.s32 0, %v609
          %v611 = vrot.slane %v597, %v610
          %v613 = vsub.f32 %v420, %v611
          %v615 = vlaneseq
          %v616 = vshrl.u32 %v615, 7
          %v617 = vsub.s32 0, %v616
          %v618 = vrot.slane %v606, %v617
          %v620 = vmul.f32 %v613, %v618
          %v621 = vld [vmem:[%s3] sm:$0x1]
          %v623 = vlaneseq
          %v624 = vshrl.u32 %v623, 7
          %v625 = vsub.s32 0, %v624
          %v626 = vrot.slane %v621, %v625
          %v628 = vadd.f32 %v620, %v626
          %v629 = vmax.f32 %v628, 0.0
          %v630 = vld [vmem:[%s4] sm:$0xff]
          %v631 = vld [vmem:[%s4 + $0x8] sm:$0xff]
          %v632 = vld [vmem:[%s4 + $0x10] sm:$0xff]
          %v633 = vld [vmem:[%s4 + $0x18] sm:$0xff]
          %v634 = vld [vmem:[%s4 + $0x20] sm:$0xff]
          %v635 = vld [vmem:[%s4 + $0x28] sm:$0xff]
          %v636 = vld [vmem:[%s4 + $0x30] sm:$0xff]
          %v637 = vld [vmem:[%s4 + $0x38] sm:$0xff]
          %v638 = vld [vmem:[%s4 + $0x40] sm:$0xff]
          %v639 = vld [vmem:[%s4 + $0x48] sm:$0xff]
          %v640 = vld [vmem:[%s4 + $0x50] sm:$0xff]
          %v641 = vld [vmem:[%s4 + $0x58] sm:$0xff]
          %v642 = vld [vmem:[%s4 + $0x60] sm:$0xff]
          %v643 = vld [vmem:[%s4 + $0x68] sm:$0xff]
          %v644 = vld [vmem:[%s4 + $0x70] sm:$0xff]
          %v645 = vld [vmem:[%s4 + $0x78] sm:$0xff]
          %646 = vmatprep.subr.mxu0 0.0
          %647 = vmatpush1.msra.mxu0 %v630
          %648 = vmatprep.subr.mxu0 0.0
          %649 = vmatpush1.msra.mxu0 %v631
          %650 = vmatprep.subr.mxu0 0.0
          %651 = vmatpush1.msra.mxu0 %v632
          %652 = vmatprep.subr.mxu0 0.0
          %653 = vmatpush1.msra.mxu0 %v633
          %654 = vmatprep.subr.mxu0 0.0
          %655 = vmatpush1.msra.mxu0 %v634
          %656 = vmatprep.subr.mxu0 0.0
          %657 = vmatpush1.msra.mxu0 %v635
          %658 = vmatprep.subr.mxu0 0.0
          %659 = vmatpush1.msra.mxu0 %v636
          %660 = vmatprep.subr.mxu0 0.0
          %661 = vmatpush1.msra.mxu0 %v637
          %662 = vmatprep.subr.mxu0 0.0
          %663 = vmatpush1.msra.mxu0 %v638
          %664 = vmatprep.subr.mxu0 0.0
          %665 = vmatpush1.msra.mxu0 %v639
          %666 = vmatprep.subr.mxu0 0.0
          %667 = vmatpush1.msra.mxu0 %v640
          %668 = vmatprep.subr.mxu0 0.0
          %669 = vmatpush1.msra.mxu0 %v641
          %670 = vmatprep.subr.mxu0 0.0
          %671 = vmatpush1.msra.mxu0 %v642
          %672 = vmatprep.subr.mxu0 0.0
          %673 = vmatpush1.msra.mxu0 %v643
          %674 = vmatprep.subr.mxu0 0.0
          %675 = vmatpush1.msra.mxu0 %v644
          %676 = vmatprep.subr.mxu0 0.0
          %677 = vmatpush1.msra.mxu0 %v645
          %678 = vmatprep.subr.mxu0 0.0
          %679 = vmatpush1.msra.mxu0 0.0
          %680 = vmatprep.subr.mxu0 0.0
          %681 = vmatpush1.msra.mxu0 0.0
          %682 = vmatprep.subr.mxu0 0.0
          %683 = vmatpush1.msra.mxu0 0.0
          %684 = vmatprep.subr.mxu0 0.0
          %685 = vmatpush1.msra.mxu0 0.0
          %686 = vmatprep.subr.mxu0 0.0
          %687 = vmatpush1.msra.mxu0 0.0
          %688 = vmatprep.subr.mxu0 0.0
          %689 = vmatpush1.msra.mxu0 0.0
          %690 = vmatprep.subr.mxu0 0.0
          %691 = vmatpush1.msra.mxu0 0.0
          %692 = vmatprep.subr.mxu0 0.0
          %693 = vmatpush1.msra.mxu0 0.0
          %694 = vmatprep.subr.mxu0 0.0
          %695 = vmatpush1.msra.mxu0 0.0
          %696 = vmatprep.subr.mxu0 0.0
          %697 = vmatpush1.msra.mxu0 0.0
          %698 = vmatprep.subr.mxu0 0.0
          %699 = vmatpush1.msra.mxu0 0.0
          %700 = vmatprep.subr.mxu0 0.0
          %701 = vmatpush1.msra.mxu0 0.0
          %702 = vmatprep.subr.mxu0 0.0
          %703 = vmatpush1.msra.mxu0 0.0
          %704 = vmatprep.subr.mxu0 0.0
          %705 = vmatpush1.msra.mxu0 0.0
          %706 = vmatprep.subr.mxu0 0.0
          %707 = vmatpush1.msra.mxu0 0.0
          %708 = vmatprep.subr.mxu0 0.0
          %709 = vmatpush1.msra.mxu0 0.0
          %710 = vmatprep.mubr.f32.mxu0 0.0
          %711 = vmatmul.mubr.f32.gmra.mrb[0].mxu0 %v629
          %v712 = vpop.f32.mrb[0].mxu0
          %v713 = vadd.f32 0.0, %v712
          %v714 = vpop.f32.mrb[0].mxu0
          %715 = vdwg.mxu0
          %v716 = vld [vmem:[#allocation4] sm:$0x1]
          %v717 = vmul.f32 %v716, 0.125
          %v718 = vld [vmem:[#allocation5] sm:$0x1]
          %v719 = vmul.f32 %v718, 0.125
          %v720 = vmul.f32 %v717, %v717
          %v721 = vsub.f32 %v719, %v720
          %v722 = vmax.f32 %v721, 0.0
          %v723 = vld [vmem:[%s5] sm:$0x1]
          %v724 = vadd.f32 %v722, 1e-05
          %v725 = vrsqrt.pop %v724
          %v726 = vmul.f32 %v723, %v725
          %v728 = vlaneseq
          %v729 = vshrl.u32 %v728, 7
          %v730 = vsub.s32 0, %v729
          %v731 = vrot.slane %v717, %v730
          %v733 = vsub.f32 %v713, %v731
          %v735 = vlaneseq
          %v736 = vshrl.u32 %v735, 7
          %v737 = vsub.s32 0, %v736
          %v738 = vrot.slane %v726, %v737
          %v740 = vmul.f32 %v733, %v738
          %v741 = vld [vmem:[%s6] sm:$0x1]
          %v743 = vlaneseq
          %v744 = vshrl.u32 %v743, 7
          %v745 = vsub.s32 0, %v744
          %v746 = vrot.slane %v741, %v745
          %v748 = vadd.f32 %v740, %v746
          %v749 = vmax.f32 %v748, 0.0
          %v750 = vld [vmem:[%s7] sm:$0xff]
          %v751 = vld [vmem:[%s7 + $0x8] sm:$0xff]
          %v752 = vld [vmem:[%s7 + $0x10] sm:$0xff]
          %v753 = vld [vmem:[%s7 + $0x18] sm:$0xff]
          %v754 = vld [vmem:[%s7 + $0x20] sm:$0xff]
          %v755 = vld [vmem:[%s7 + $0x28] sm:$0xff]
          %v756 = vld [vmem:[%s7 + $0x30] sm:$0xff]
          %v757 = vld [vmem:[%s7 + $0x38] sm:$0xff]
          %v758 = vld [vmem:[%s8] sm:$0x1]
          %v760 = vlaneseq
          %v761 = vshrl.u32 %v760, 7
          %v762 = vsub.s32 0, %v761
          %v763 = vrot.slane %v758, %v762
          %vm765 = vcmask 523264
          %v767 = vsel %vm765, %v749, 0
          %769 = vmatprep.subr.mxu0 0.0
          %770 = vmatpush1.msra.mxu0 %v750
          %771 = vmatprep.subr.mxu0 0.0
          %772 = vmatpush1.msra.mxu0 %v751
          %773 = vmatprep.subr.mxu0 0.0
          %774 = vmatpush1.msra.mxu0 %v752
          %775 = vmatprep.subr.mxu0 0.0
          %776 = vmatpush1.msra.mxu0 %v753
          %777 = vmatprep.subr.mxu0 0.0
          %778 = vmatpush1.msra.mxu0 %v754
          %779 = vmatprep.subr.mxu0 0.0
          %780 = vmatpush1.msra.mxu0 %v755
          %781 = vmatprep.subr.mxu0 0.0
          %782 = vmatpush1.msra.mxu0 %v756
          %783 = vmatprep.subr.mxu0 0.0
          %784 = vmatpush1.msra.mxu0 %v757
          %785 = vmatprep.subr.mxu0 0.0
          %786 = vmatpush1.msra.mxu0 0.0
          %787 = vmatprep.subr.mxu0 0.0
          %788 = vmatpush1.msra.mxu0 0.0
          %789 = vmatprep.subr.mxu0 0.0
          %790 = vmatpush1.msra.mxu0 0.0
          %791 = vmatprep.subr.mxu0 0.0
          %792 = vmatpush1.msra.mxu0 0.0
          %793 = vmatprep.subr.mxu0 0.0
          %794 = vmatpush1.msra.mxu0 0.0
          %795 = vmatprep.subr.mxu0 0.0
          %796 = vmatpush1.msra.mxu0 0.0
          %797 = vmatprep.subr.mxu0 0.0
          %798 = vmatpush1.msra.mxu0 0.0
          %799 = vmatprep.subr.mxu0 0.0
          %800 = vmatpush1.msra.mxu0 0.0
          %801 = vmatprep.subr.mxu0 0.0
          %802 = vmatpush1.msra.mxu0 0.0
          %803 = vmatprep.subr.mxu0 0.0
          %804 = vmatpush1.msra.mxu0 0.0
          %805 = vmatprep.subr.mxu0 0.0
          %806 = vmatpush1.msra.mxu0 0.0
          %807 = vmatprep.subr.mxu0 0.0
          %808 = vmatpush1.msra.mxu0 0.0
          %809 = vmatprep.subr.mxu0 0.0
          %810 = vmatpush1.msra.mxu0 0.0
          %811 = vmatprep.subr.mxu0 0.0
          %812 = vmatpush1.msra.mxu0 0.0
          %813 = vmatprep.subr.mxu0 0.0
          %814 = vmatpush1.msra.mxu0 0.0
          %815 = vmatprep.subr.mxu0 0.0
          %816 = vmatpush1.msra.mxu0 0.0
          %817 = vmatprep.subr.mxu0 0.0
          %818 = vmatpush1.msra.mxu0 0.0
          %819 = vmatprep.subr.mxu0 0.0
          %820 = vmatpush1.msra.mxu0 0.0
          %821 = vmatprep.subr.mxu0 0.0
          %822 = vmatpush1.msra.mxu0 0.0
          %823 = vmatprep.subr.mxu0 0.0
          %824 = vmatpush1.msra.mxu0 0.0
          %825 = vmatprep.subr.mxu0 0.0
          %826 = vmatpush1.msra.mxu0 0.0
          %827 = vmatprep.subr.mxu0 0.0
          %828 = vmatpush1.msra.mxu0 0.0
          %829 = vmatprep.subr.mxu0 0.0
          %830 = vmatpush1.msra.mxu0 0.0
          %831 = vmatprep.subr.mxu0 0.0
          %832 = vmatpush1.msra.mxu0 0.0
          %833 = vmatprep.mubr.f32.mxu0 0.0
          %834 = vmatmul.mubr.f32.gmra.mrb[0].mxu0 %v767
          %v835 = vpop.f32.mrb[0].mxu0
          %v836 = vadd.f32 %v763, %v835
          %v837 = vpop.f32.mrb[0].mxu0
          %838 = vdwg.mxu0
          %839 = vst [vmem:[#allocation6] sm:$0xff] %v836
        $region72: #{tpu_custom_call.1} parent=55 // pred_fallthru
          _
        // Predicated region
        $region73: #{tpu_custom_call.1} parent=55 // pred_check
          %p840 = pneg %p245
        $region74: #{tpu_custom_call.1} parent=55 // pred_check_branch
          %842 = sbr.rel (%p840) target = $region76
        $region75: #{tpu_custom_call.1} parent=55 // pred_region
          %s844 = ssub.s32 128, 128
          %845 = vsyncadd [#allocation7], %s844
          %s846 = smul.addr %s26, 128
          %s847 = scalar_lea.hbm %s9, %s846
          %s849 = sshll.u32 [#allocation6], 4
          %s850 = int_to_ptr.vmem [resolvable:$true] %s849
          %852 = dma.vmem_to_hbm [thread:$0]  %s850, 128, %s847, [#allocation7]
        $region76: #{tpu_custom_call.1} parent=55 // pred_fallthru
          _
        // Predicated region
        $region77: #{tpu_custom_call.1} parent=55 // pred_check
          %p853 = pneg %p245
        $region78: #{tpu_custom_call.1} parent=55 // pred_check_branch
          %855 = sbr.rel (%p853) target = $region80
        $region79: #{tpu_custom_call.1} parent=55 // pred_region
          %856 = dma.done [#allocation7], 128
        $region80: #{tpu_custom_call.1} parent=55 // pred_fallthru
          _
      $region56: #{tpu_custom_call.1} parent=5 // pred_fallthru
        _
      %p857 = scmp.le.s32.totalorder 2, %s16
      // Predicated region
      $region81: #{tpu_custom_call.1} parent=5 // pred_check
        %p858 = pneg %p857
      $region82: #{tpu_custom_call.1} parent=5 // pred_check_branch
        %860 = sbr.rel (%p858) target = $region84
      $region83: #{tpu_custom_call.1} parent=5 // pred_region
        %s861 = ssub.s32 %s16, 2
      $region84: #{tpu_custom_call.1} parent=5 // pred_fallthru
        _
    $region6: #{tpu_custom_call.1} parent=1 // loop_footer
      %s20 = sadd.s32 1, %s16
    $region7: #{tpu_custom_call.1} parent=1 // loop_footer_branch
      %15 = sbr.rel target = $region3
    $region8: #{tpu_custom_call.1} parent=1 // loop_exit
      _
    %862 = vsyncpa [#allocation7], 1
    %s863 = scalar_lea.sflag [#allocation7], 1
    %864 = vsyncpa %s863, 1

</llo_original>
